<compile_context>
chip_gen: v5e
topology: v5e:2x2
jax: 0.10.0
libtpu: 0.0.40
codegen_flags: <defaults>
</compile_context>

<pallas_src>
import functools

import jax
import jax.numpy as jnp
from jax.experimental import pallas as pl
from jax.experimental.pallas import tpu as pltpu


def _round_up(x, m):
    return (x + m - 1) // m * m


def _cdiv(a, b):
    return -(-a // b)


def _physical_vmem_bytes():
    try:
        return int(pltpu.get_tpu_info().vmem_capacity_bytes)
    except Exception:
        return 64 << 20  # conservative (v7x) default


def _num_tensorcores():
    # Best-effort query; assume 1 (v5e/v6e) when unknown.
    try:
        info = pltpu.get_tpu_info()
        for attr in ("num_cores", "core_count", "tensorcore_count", "num_tensorcores"):
            v = getattr(info, attr, None)
            if v:
                return int(v)
    except Exception:
        pass
    return 1


def _feedforward_kernel(x_ref, w1_ref, b1_ref, w2_ref, b2_ref,
                        gamma_ref, beta_ref, o_ref, acc_ref, *, eps, n_valid):
    """One (row-tile, hidden-chunk) grid step.

    x_ref:  (tm, n_in_p) row tile (lane-dense feature axis)
    w1_ref: (n_in_p, tk) hidden chunk of W1;   b1_ref: (1, tk)
    w2_ref: (tk, n_in_p) hidden chunk of W2;   b2/gamma/beta: (1, n_in_p)
    acc_ref: (tm, n_in_p) f32 accumulator for linear2 over hidden chunks.
    """
    k = pl.program_id(1)

    @pl.when(k == 0)
    def _():
        acc_ref[...] = jnp.zeros_like(acc_ref)

    x = x_ref[...]

    # linear1 chunk + ReLU.  Operands in the weight dtype (bf16 by default)
    # so the MXU runs at native rate; accumulation stays f32.
    h = jnp.dot(x.astype(w1_ref.dtype), w1_ref[...],
                preferred_element_type=jnp.float32)
    h = jnp.maximum(h + b1_ref[...].astype(jnp.float32), 0.0)
    # TODO(synk): training-mode dropout1 (PRNG mask) not implemented (eval semantics).

    # linear2 chunk, accumulated over hidden chunks.
    acc_ref[...] += jnp.dot(h.astype(w2_ref.dtype), w2_ref[...],
                            preferred_element_type=jnp.float32)

    @pl.when(k == pl.num_programs(1) - 1)
    def _():
        y = acc_ref[...] + b2_ref[...].astype(jnp.float32)
        # TODO(synk): training-mode dropout2 not implemented (eval semantics).
        z = y + x.astype(jnp.float32)

        # Residual + LayerNorm over the true feature count only.  Padded lanes
        # are zero by construction but are masked out of the stats anyway.
        n_pad = z.shape[-1]
        if n_valid != n_pad:
            lane = jax.lax.broadcasted_iota(jnp.int32, (1, n_pad), 1)
            mask = lane < n_valid
            z = jnp.where(mask, z, 0.0)
        inv_n = 1.0 / float(n_valid)
        mean = jnp.sum(z, axis=-1, keepdims=True) * inv_n
        zc = z - mean
        if n_valid != n_pad:
            zc = jnp.where(mask, zc, 0.0)
        var = jnp.sum(zc * zc, axis=-1, keepdims=True) * inv_n
        out = zc * jax.lax.rsqrt(var + eps)
        out = out * gamma_ref[...].astype(jnp.float32) + beta_ref[...].astype(jnp.float32)
        o_ref[...] = out.astype(o_ref.dtype)


def _vmem_working_set(tm, tk, n_in_p, act_bytes, w_bytes):
    io = 2 * tm * n_in_p * (act_bytes + act_bytes)        # x + out tiles, double-buffered
    wts = 2 * 2 * n_in_p * tk * w_bytes                   # W1 + W2 chunks, double-buffered
    small = 2 * (tk + 3 * n_in_p) * 4                     # b1 chunk, b2, gamma, beta
    acc = tm * n_in_p * 4                                 # accumulator scratch
    # temporaries that can coexist: ~5 f32 (tm,n_in_p) copies (x_f32/y/z/zc/out),
    # x cast to weight dtype, h in f32 + cast to weight dtype.
    temps = tm * n_in_p * (5 * 4 + w_bytes) + tm * tk * (4 + w_bytes)
    return io + wts + small + acc + temps


def prepare_feedforward_params(w1, b1, w2, b2, gamma, beta, *,
                               weight_dtype=jnp.bfloat16):
    """One-time parameter prep: dtype cast + lane (128) padding.

    Call once at parameter-load time and reuse; doing this per forward step
    wastes a full HBM pass over the weights."""
    n_input, n_hidden = w1.shape
    n_in_p = _round_up(n_input, 128)
    n_hid_p = _round_up(n_hidden, 128)
    wdt = jnp.dtype(weight_dtype)
    w1p = jnp.pad(jnp.asarray(w1, wdt),
                  ((0, n_in_p - n_input), (0, n_hid_p - n_hidden)))
    b1p = jnp.pad(jnp.asarray(b1, jnp.float32), (0, n_hid_p - n_hidden)).reshape(1, n_hid_p)
    w2p = jnp.pad(jnp.asarray(w2, wdt),
                  ((0, n_hid_p - n_hidden), (0, n_in_p - n_input)))
    b2p = jnp.pad(jnp.asarray(b2, jnp.float32), (0, n_in_p - n_input)).reshape(1, n_in_p)
    gp = jnp.pad(jnp.asarray(gamma, jnp.float32), (0, n_in_p - n_input)).reshape(1, n_in_p)
    bp = jnp.pad(jnp.asarray(beta, jnp.float32), (0, n_in_p - n_input)).reshape(1, n_in_p)
    return {"w1": w1p, "b1": b1p, "w2": w2p, "b2": b2p, "gamma": gp, "beta": bp,
            "n_input": n_input, "n_hidden": n_hidden}


def feedforward_pallas(x, params, *, eps=1e-5, tm=None, tk=None):
    """x: (B, T, n_input); params: output of prepare_feedforward_params."""
    B, T, n_input = x.shape
    assert n_input == params["n_input"], "parameter / input feature mismatch"
    M = B * T
    n_in_p, n_hid_p = params["w1"].shape
    w_bytes = params["w1"].dtype.itemsize
    act_bytes = x.dtype.itemsize
    sub_min = {4: 8, 2: 16, 1: 32}.get(act_bytes, 8)

    phys_vmem = _physical_vmem_bytes()
    budget = int(phys_vmem * 0.7)
    n_tc = _num_tensorcores()

    # ---- row tile -------------------------------------------------------
    if tm is None:
        if M <= 512:
            tm = _round_up(M, sub_min)
        else:
            tm = 512
            # Only shrink for grid parallelism on multi-TensorCore chips (v7x):
            # keep >= 2 row tiles per core so input DMA / store pipeline
            # against MXU.  Single-TC chips gain nothing from extra steps.
            if n_tc > 1:
                while tm > 128 and _cdiv(M, tm) < 2 * n_tc:
                    tm -= 128
    tm = max(sub_min, _round_up(tm, sub_min))

    # ---- hidden chunk (must divide the padded hidden dim exactly) --------
    m128 = n_hid_p // 128
    cands = [128 * d for d in range(m128, 0, -1) if m128 % d == 0]  # descending
    if tk is not None:
        tk = max([c for c in cands if c <= max(tk, 128)] or [cands[-1]])
    else:
        tk = cands[-1]
        for c in cands:
            if _vmem_working_set(tm, c, n_in_p, act_bytes, w_bytes) <= budget:
                tk = c
                break
    # If even the smallest hidden chunk is too big, shrink the row tile.
    while tm > 128 and _vmem_working_set(tm, tk, n_in_p, act_bytes, w_bytes) > budget:
        tm -= 128

    n_rows = _cdiv(M, tm)
    n_k = n_hid_p // tk
    grid = (n_rows, n_k)

    needed = _vmem_working_set(tm, tk, n_in_p, act_bytes, w_bytes)
    vmem_limit = int(min(max(needed + (4 << 20), 32 << 20), int(phys_vmem * 0.98)))

    # Lane-dense feature padding of the activations (only when actually
    # needed; the only per-call data-prep pass left).
    x2d = x.reshape(M, n_input)
    if n_in_p != n_input:
        x2d = jnp.pad(x2d, ((0, 0), (0, n_in_p - n_input)))

    kernel = functools.partial(_feedforward_kernel, eps=eps, n_valid=n_input)

    flops = 4 * M * n_in_p * n_hid_p + 10 * M * n_in_p
    w_hbm = 2 * n_in_p * n_hid_p * w_bytes * (n_rows if n_k > 1 else 1)
    bytes_accessed = 2 * M * n_in_p * act_bytes + w_hbm + (n_hid_p + 3 * n_in_p) * 4
    cost = pl.CostEstimate(flops=flops, transcendentals=M,
                           bytes_accessed=bytes_accessed)

    out2d = pl.pallas_call(
        kernel,
        out_shape=jax.ShapeDtypeStruct((M, n_in_p), x.dtype),
        grid_spec=pltpu.PrefetchScalarGridSpec(
            num_scalar_prefetch=0,
            grid=grid,
            in_specs=[
                pl.BlockSpec((tm, n_in_p), lambda i, k: (i, 0)),   # x row tile
                pl.BlockSpec((n_in_p, tk), lambda i, k: (0, k)),   # W1 chunk (streamed)
                pl.BlockSpec((1, tk), lambda i, k: (0, k)),        # b1 chunk
                pl.BlockSpec((tk, n_in_p), lambda i, k: (k, 0)),   # W2 chunk (streamed)
                pl.BlockSpec((1, n_in_p), lambda i, k: (0, 0)),    # b2
                pl.BlockSpec((1, n_in_p), lambda i, k: (0, 0)),    # gamma
                pl.BlockSpec((1, n_in_p), lambda i, k: (0, 0)),    # beta
            ],
            out_specs=pl.BlockSpec((tm, n_in_p), lambda i, k: (i, 0)),
            scratch_shapes=[pltpu.VMEM((tm, n_in_p), jnp.float32)],
        ),
        compiler_params=pltpu.CompilerParams(
            dimension_semantics=("parallel", "arbitrary"),
            vmem_limit_bytes=vmem_limit),
        cost_estimate=cost,
    )(x2d, params["w1"], params["b1"], params["w2"], params["b2"],
      params["gamma"], params["beta"])

    if n_in_p != n_input:
        out2d = out2d[:, :n_input]
    return out2d.reshape(B, T, n_input)


def feedforward_pallas_raw(x, w1, b1, w2, b2, gamma, beta, *, eps=1e-5,
                           weight_dtype=jnp.bfloat16, tm=None, tk=None):
    """Convenience wrapper that re-prepares parameters on every call.  For
    real use, call prepare_feedforward_params once and reuse the result."""
    params = prepare_feedforward_params(w1, b1, w2, b2, gamma, beta,
                                        weight_dtype=weight_dtype)
    return feedforward_pallas(x, params, eps=eps, tm=tm, tk=tk)


def _reference(x, w1, b1, w2, b2, gamma, beta, eps=1e-5):
    h = jnp.maximum(x @ w1 + b1, 0.0)
    y = h @ w2 + b2
    z = y + x
    mean = jnp.mean(z, axis=-1, keepdims=True)
    var = jnp.var(z, axis=-1, keepdims=True)
    return (z - mean) / jnp.sqrt(var + eps) * gamma + beta


def _make_params(key, n_input, n_hidden):
    k1, k2, k3, k4 = jax.random.split(key, 4)
    bound1 = float(n_input) ** -0.5
    w1 = jax.random.uniform(k1, (n_input, n_hidden), jnp.float32, -bound1, bound1)
    b1 = jax.random.uniform(k2, (n_hidden,), jnp.float32, -bound1, bound1)
    bound2 = float(n_hidden) ** -0.5
    w2 = jax.random.uniform(k3, (n_hidden, n_input), jnp.float32, -bound2, bound2)
    b2 = jax.random.uniform(k4, (n_input,), jnp.float32, -bound2, bound2)
    gamma = jnp.ones((n_input,), jnp.float32)
    beta = jnp.zeros((n_input,), jnp.float32)
    return w1, b1, w2, b2, gamma, beta


if __name__ == "__main__":
    key = jax.random.PRNGKey(0)
    kx1, kp1, kx2, kp2, kx3, kp3 = jax.random.split(key, 6)

    # Case 1: toy shape; features < 128 exercise lane padding + masked LayerNorm.
    B, T, n_input, n_hidden = 2, 8, 32, 64
    x = jax.random.normal(kx1, (B, T, n_input), dtype=jnp.float32)
    params_raw = _make_params(kp1, n_input, n_hidden)
    ref = _reference(x, *params_raw)

    # 1a: default bf16 matmul operands (MXU-native path); loose tolerance.
    p_bf16 = prepare_feedforward_params(*params_raw)
    out = jax.block_until_ready(feedforward_pallas(x, p_bf16))
    assert out.shape == x.shape and out.dtype == x.dtype
    assert jnp.allclose(out, ref, atol=3e-2, rtol=3e-2), "case1 bf16 mismatch"

    # 1b: f32 weights; exact-path validation with tight tolerance.
    p_f32 = prepare_feedforward_params(*params_raw, weight_dtype=jnp.float32)
    out_f32 = jax.block_until_ready(feedforward_pallas(x, p_f32))
    assert jnp.allclose(out_f32, ref, atol=1e-5, rtol=1e-5), "case1 f32 mismatch"

    # Case 2: rows not a multiple of 8 and odd feature sizes -> ragged last row
    # tile (no wrapper row padding) + feature padding.
    B2, T2, n_input2, n_hidden2 = 2, 50, 48, 96
    x2 = jax.random.normal(kx2, (B2, T2, n_input2), dtype=jnp.float32)
    params2 = _make_params(kp2, n_input2, n_hidden2)
    p2 = prepare_feedforward_params(*params2, weight_dtype=jnp.float32)
    out2 = jax.block_until_ready(feedforward_pallas(x2, p2))
    ref2 = _reference(x2, *params2)
    assert out2.shape == x2.shape and out2.dtype == x2.dtype
    assert jnp.allclose(out2, ref2, atol=1e-5, rtol=1e-5), "case2 mismatch"

    # Case 3: forced hidden-dim streaming (tk < n_hidden) -> exercises the
    # k-chunk accumulator + epilogue path.
    B3, T3, n_input3, n_hidden3 = 2, 16, 128, 384
    x3 = jax.random.normal(kx3, (B3, T3, n_input3), dtype=jnp.float32)
    params3 = _make_params(kp3, n_input3, n_hidden3)
    p3 = prepare_feedforward_params(*params3, weight_dtype=jnp.float32)
    out3 = jax.block_until_ready(feedforward_pallas(x3, p3, tk=128))
    ref3 = _reference(x3, *params3)
    assert jnp.allclose(out3, ref3, atol=1e-4, rtol=1e-4), "case3 mismatch"

    print("KERNEL_OK")
</pallas_src>

<mosaic_0001>
module attributes {stable_mosaic.version = 11 : i64} {
  func.func @_feedforward_kernel(%arg0: i32, %arg1: i32, %arg2: memref<16x128xf32, #tpu.memory_space<vmem>>, %arg3: memref<128x128xbf16, #tpu.memory_space<vmem>>, %arg4: memref<1x128xf32, #tpu.memory_space<vmem>>, %arg5: memref<128x128xbf16, #tpu.memory_space<vmem>>, %arg6: memref<1x128xf32, #tpu.memory_space<vmem>>, %arg7: memref<1x128xf32, #tpu.memory_space<vmem>>, %arg8: memref<1x128xf32, #tpu.memory_space<vmem>>, %arg9: memref<16x128xf32, #tpu.memory_space<vmem>>, %arg10: memref<16x128xf32, #tpu.memory_space<vmem>>) attributes {dimension_semantics = [#tpu.dimension_semantics<parallel>, #tpu.dimension_semantics<arbitrary>], iteration_bounds = array<i64: 1, 1>, scalar_prefetch = 0 : i64, scratch_operands = 1 : i64, tpu.core_type = #tpu.core_type<tc>, window_params = [{transform_indices = @transform_0, window_bounds = array<i64: 16, 128>}, {transform_indices = @transform_1, window_bounds = array<i64: 128, 128>}, {transform_indices = @transform_2, window_bounds = array<i64: 1, 128>}, {transform_indices = @transform_3, window_bounds = array<i64: 128, 128>}, {pipeline_mode = #tpu.pipeline_mode<synchronous>, transform_indices = @transform_4, window_bounds = array<i64: 1, 128>}, {pipeline_mode = #tpu.pipeline_mode<synchronous>, transform_indices = @transform_5, window_bounds = array<i64: 1, 128>}, {pipeline_mode = #tpu.pipeline_mode<synchronous>, transform_indices = @transform_6, window_bounds = array<i64: 1, 128>}, {transform_indices = @transform_7, window_bounds = array<i64: 16, 128>}]} {
    %c0_i32 = arith.constant 0 : i32
    %0 = arith.cmpi eq, %arg1, %c0_i32 : i32
    %1 = arith.extui %0 : i1 to i32
    %c0_i32_0 = arith.constant 0 : i32
    %2 = arith.cmpi ne, %1, %c0_i32_0 : i32
    scf.if %2 {
      %cst_16 = arith.constant 0.000000e+00 : f32
      %21 = vector.broadcast %cst_16 : f32 to vector<16x128xf32>
      %c0_17 = arith.constant 0 : index
      %c0_18 = arith.constant 0 : index
      %22 = vector.load %arg10[%c0_17, %c0_18] : memref<16x128xf32, #tpu.memory_space<vmem>>, vector<16x128xf32>
      tpu.vector_store %arg10[%c0_17, %c0_18], %21 {strides = array<i32>} : memref<16x128xf32, #tpu.memory_space<vmem>>, vector<16x128xf32>,
    } else {
    }
    %c0 = arith.constant 0 : index
    %c0_1 = arith.constant 0 : index
    %3 = vector.load %arg2[%c0, %c0_1] : memref<16x128xf32, #tpu.memory_space<vmem>>, vector<16x128xf32>
    %4 = arith.truncf %3 : vector<16x128xf32> to vector<16x128xbf16>
    %c0_2 = arith.constant 0 : index
    %c0_3 = arith.constant 0 : index
    %5 = vector.load %arg3[%c0_2, %c0_3] : memref<128x128xbf16, #tpu.memory_space<vmem>>, vector<128x128xbf16>
    %cst = arith.constant dense<0.000000e+00> : vector<16x128xf32>
    %6 = tpu.matmul %4, %5, %cst {dimension_numbers = #tpu.dot_dimension_numbers<[1], [0], [0], [1], [0, 0, 1, 1], [], []>} : vector<16x128xbf16>, vector<128x128xbf16>, vector<16x128xf32> -> vector<16x128xf32>
    %c0_4 = arith.constant 0 : index
    %c0_5 = arith.constant 0 : index
    %7 = vector.load %arg4[%c0_4, %c0_5] : memref<1x128xf32, #tpu.memory_space<vmem>>, vector<1x128xf32>
    %8 = vector.broadcast %7 : vector<1x128xf32> to vector<16x128xf32>
    %9 = arith.addf %6, %8 : vector<16x128xf32>
    %cst_6 = arith.constant 0.000000e+00 : f32
    %10 = vector.broadcast %cst_6 : f32 to vector<16x128xf32>
    %11 = arith.maximumf %9, %10 : vector<16x128xf32>
    %c0_7 = arith.constant 0 : index
    %c0_8 = arith.constant 0 : index
    %12 = vector.load %arg10[%c0_7, %c0_8] : memref<16x128xf32, #tpu.memory_space<vmem>>, vector<16x128xf32>
    %13 = arith.truncf %11 : vector<16x128xf32> to vector<16x128xbf16>
    %c0_9 = arith.constant 0 : index
    %c0_10 = arith.constant 0 : index
    %14 = vector.load %arg5[%c0_9, %c0_10] : memref<128x128xbf16, #tpu.memory_space<vmem>>, vector<128x128xbf16>
    %cst_11 = arith.constant dense<0.000000e+00> : vector<16x128xf32>
    %15 = tpu.matmul %13, %14, %cst_11 {dimension_numbers = #tpu.dot_dimension_numbers<[1], [0], [0], [1], [0, 0, 1, 1], [], []>} : vector<16x128xbf16>, vector<128x128xbf16>, vector<16x128xf32> -> vector<16x128xf32>
    %16 = arith.addf %12, %15 : vector<16x128xf32>
    %c0_12 = arith.constant 0 : index
    %c0_13 = arith.constant 0 : index
    %17 = vector.load %arg10[%c0_12, %c0_13] : memref<16x128xf32, #tpu.memory_space<vmem>>, vector<16x128xf32>
    tpu.vector_store %arg10[%c0_12, %c0_13], %16 {strides = array<i32>} : memref<16x128xf32, #tpu.memory_space<vmem>>, vector<16x128xf32>,
    %c0_i32_14 = arith.constant 0 : i32
    %18 = arith.cmpi eq, %arg1, %c0_i32_14 : i32
    %19 = arith.extui %18 : i1 to i32
    %c0_i32_15 = arith.constant 0 : i32
    %20 = arith.cmpi ne, %19, %c0_i32_15 : i32
    scf.if %20 {
      %c0_16 = arith.constant 0 : index
      %c0_17 = arith.constant 0 : index
      %21 = vector.load %arg10[%c0_16, %c0_17] : memref<16x128xf32, #tpu.memory_space<vmem>>, vector<16x128xf32>
      %c0_18 = arith.constant 0 : index
      %c0_19 = arith.constant 0 : index
      %22 = vector.load %arg6[%c0_18, %c0_19] : memref<1x128xf32, #tpu.memory_space<vmem>>, vector<1x128xf32>
      %23 = vector.broadcast %22 : vector<1x128xf32> to vector<16x128xf32>
      %24 = arith.addf %21, %23 : vector<16x128xf32>
      %25 = arith.addf %24, %3 : vector<16x128xf32>
      %26 = tpu.iota {dimensions = array<i32: 1>} : vector<1x128xi32>
      %c32_i32 = arith.constant 32 : i32
      %27 = vector.broadcast %c32_i32 : i32 to vector<1x128xi32>
      %28 = arith.cmpi slt, %26, %27 : vector<1x128xi32>
      %cst_20 = arith.constant 0.000000e+00 : f32
      %29 = vector.shape_cast %28 : vector<1x128xi1> to vector<1x128xi1>
      %30 = vector.broadcast %29 : vector<1x128xi1> to vector<16x128xi1>
      %31 = vector.broadcast %cst_20 : f32 to vector<16x128xf32>
      %32 = arith.select %30, %25, %31 : vector<16x128xi1>, vector<16x128xf32>
      %cst_21 = arith.constant dense<0.000000e+00> : vector<16xf32>
      %33 = vector.multi_reduction <add>, %32, %cst_21 [1] : vector<16x128xf32> to vector<16xf32>
      %34 = vector.shape_cast %33 : vector<16xf32> to vector<16x1xf32>
      %cst_22 = arith.constant 3.125000e-02 : f32
      %35 = vector.broadcast %cst_22 : f32 to vector<16x1xf32>
      %36 = arith.mulf %34, %35 : vector<16x1xf32>
      %37 = vector.broadcast %36 : vector<16x1xf32> to vector<16x128xf32>
      %38 = arith.subf %32, %37 : vector<16x128xf32>
      %cst_23 = arith.constant 0.000000e+00 : f32
      %39 = vector.shape_cast %28 : vector<1x128xi1> to vector<1x128xi1>
      %40 = vector.broadcast %39 : vector<1x128xi1> to vector<16x128xi1>
      %41 = vector.broadcast %cst_23 : f32 to vector<16x128xf32>
      %42 = arith.select %40, %38, %41 : vector<16x128xi1>, vector<16x128xf32>
      %43 = arith.mulf %42, %42 : vector<16x128xf32>
      %cst_24 = arith.constant dense<0.000000e+00> : vector<16xf32>
      %44 = vector.multi_reduction <add>, %43, %cst_24 [1] : vector<16x128xf32> to vector<16xf32>
      %45 = vector.shape_cast %44 : vector<16xf32> to vector<16x1xf32>
      %cst_25 = arith.constant 3.125000e-02 : f32
      %46 = vector.broadcast %cst_25 : f32 to vector<16x1xf32>
      %47 = arith.mulf %45, %46 : vector<16x1xf32>
      %cst_26 = arith.constant 9.99999974E-6 : f32
      %48 = vector.broadcast %cst_26 : f32 to vector<16x1xf32>
      %49 = arith.addf %47, %48 : vector<16x1xf32>
      %50 = math.rsqrt %49 : vector<16x1xf32>
      %51 = vector.broadcast %50 : vector<16x1xf32> to vector<16x128xf32>
      %52 = arith.mulf %42, %51 : vector<16x128xf32>
      %c0_27 = arith.constant 0 : index
      %c0_28 = arith.constant 0 : index
      %53 = vector.load %arg7[%c0_27, %c0_28] : memref<1x128xf32, #tpu.memory_space<vmem>>, vector<1x128xf32>
      %54 = vector.broadcast %53 : vector<1x128xf32> to vector<16x128xf32>
      %55 = arith.mulf %52, %54 : vector<16x128xf32>
      %c0_29 = arith.constant 0 : index
      %c0_30 = arith.constant 0 : index
      %56 = vector.load %arg8[%c0_29, %c0_30] : memref<1x128xf32, #tpu.memory_space<vmem>>, vector<1x128xf32>
      %57 = vector.broadcast %56 : vector<1x128xf32> to vector<16x128xf32>
      %58 = arith.addf %55, %57 : vector<16x128xf32>
      %c0_31 = arith.constant 0 : index
      %c0_32 = arith.constant 0 : index
      %59 = vector.load %arg9[%c0_31, %c0_32] : memref<16x128xf32, #tpu.memory_space<vmem>>, vector<16x128xf32>
      tpu.vector_store %arg9[%c0_31, %c0_32], %58 {strides = array<i32>} : memref<16x128xf32, #tpu.memory_space<vmem>>, vector<16x128xf32>,
    } else {
    }
    return
  }
  func.func @transform_0(%arg0: i32, %arg1: i32) -> (i32, i32) {
    %c0_i32 = arith.constant 0 : i32
    %c0_i32_0 = arith.constant 0 : i32
    return %arg0, %c0_i32 : i32, i32
  }
  func.func @transform_1(%arg0: i32, %arg1: i32) -> (i32, i32) {
    %c0_i32 = arith.constant 0 : i32
    %c0_i32_0 = arith.constant 0 : i32
    return %c0_i32, %arg1 : i32, i32
  }
  func.func @transform_2(%arg0: i32, %arg1: i32) -> (i32, i32) {
    %c0_i32 = arith.constant 0 : i32
    %c0_i32_0 = arith.constant 0 : i32
    return %c0_i32, %arg1 : i32, i32
  }
  func.func @transform_3(%arg0: i32, %arg1: i32) -> (i32, i32) {
    %c0_i32 = arith.constant 0 : i32
    %c0_i32_0 = arith.constant 0 : i32
    return %arg1, %c0_i32 : i32, i32
  }
  func.func @transform_4(%arg0: i32, %arg1: i32) -> (i32, i32) {
    %c0_i32 = arith.constant 0 : i32
    %c0_i32_0 = arith.constant 0 : i32
    %c0_i32_1 = arith.constant 0 : i32
    return %c0_i32, %c0_i32_0 : i32, i32
  }
  func.func @transform_5(%arg0: i32, %arg1: i32) -> (i32, i32) {
    %c0_i32 = arith.constant 0 : i32
    %c0_i32_0 = arith.constant 0 : i32
    %c0_i32_1 = arith.constant 0 : i32
    return %c0_i32, %c0_i32_0 : i32, i32
  }
  func.func @transform_6(%arg0: i32, %arg1: i32) -> (i32, i32) {
    %c0_i32 = arith.constant 0 : i32
    %c0_i32_0 = arith.constant 0 : i32
    %c0_i32_1 = arith.constant 0 : i32
    return %c0_i32, %c0_i32_0 : i32, i32
  }
  func.func @transform_7(%arg0: i32, %arg1: i32) -> (i32, i32) {
    %c0_i32 = arith.constant 0 : i32
    %c0_i32_0 = arith.constant 0 : i32
    return %arg0, %c0_i32 : i32, i32
  }
}

</mosaic_0001>

<llo_original>
// kernel: tpu_custom_call.1
$region0: #{tpu_custom_call.1}
  #allocation0 [shape = 'u32[]', space=smem, size = 0x4, offset = 0x4, fixed_abs, tag = 'smem constant byte address 0x4 - core index']
  #allocation1 [shape = 'u32[72,128]{1,0:T(1,128)}', space=vmem, size = 0x9000, scoped, tag = 'internal scratch']
  #allocation2 [shape = 'f32[16,128]{1,0:T(8,128)}', space=vmem, size = 0x2000, scoped, tag = 'scratch operand']
  %s0 = inlined_call_operand.hbm [shape: f32[16,128], index: 0, kind: input, shape index: {}]
  %s1 = inlined_call_operand.hbm [shape: bf16[128,128], index: 1, kind: input, shape index: {}]
  %s2 = inlined_call_operand.vmem [shape: f32[1,128], index: 2, kind: input, shape index: {}]
  %s3 = inlined_call_operand.hbm [shape: bf16[128,128], index: 3, kind: input, shape index: {}]
  %s4 = inlined_call_operand.vmem [shape: f32[1,128], index: 4, kind: input, shape index: {}]
  %s5 = inlined_call_operand.vmem [shape: f32[1,128], index: 5, kind: input, shape index: {}]
  %s6 = inlined_call_operand.vmem [shape: f32[1,128], index: 6, kind: input, shape index: {}]
  %s7 = inlined_call_operand.hbm [shape: f32[16,128], index: 7, kind: output, shape index: {}]
  %s8 = sld [smem:[#allocation0]]
  $region58: #{tpu_custom_call.1} parent=0
    _
  %s10 = ssub.s32 1, %s8
  %s11 = scalar_select 0, %s10, %s8
  $region1: #{tpu_custom_call.1} parent=0
    #allocation3 [shape = 'u8[8192]{0}', space=vmem, size = 0x2000, scoped, tag = 'input window, operand 0, single buffered']
    #allocation4 [shape = 's32[1]{0}', space=sflag, size = 0x4, scoped, tag = 'scoped memory for tpu_custom_call.1']
    #allocation5 [shape = 's32[1]{0}', space=sflag, size = 0x4, scoped, tag = 'scoped memory for tpu_custom_call.1']
    #allocation6 [shape = 'u8[32768]{0}', space=vmem, size = 0x8000, scoped, tag = 'input window, operand 1, single buffered']
    #allocation7 [shape = 's32[1]{0}', space=sflag, size = 0x4, scoped, tag = 'scoped memory for tpu_custom_call.1']
    #allocation8 [shape = 'u8[32768]{0}', space=vmem, size = 0x8000, scoped, tag = 'input window, operand 3, single buffered']
    #allocation9 [shape = 'u8[8192]{0}', space=vmem, size = 0x2000, scoped, tag = 'output window, operand 0, single buffered']
    %12 = vsyncpa [#allocation4], 0
    %13 = vsyncpa [#allocation7], 0
    %14 = vsyncpa [#allocation5], 0
    // Predicated region
    $region2: #{tpu_custom_call.1} parent=1 // pred_check
      _
    $region3: #{tpu_custom_call.1} parent=1 // pred_check_branch
      %16 = sbr.rel (0) target = $region5
    $region4: #{tpu_custom_call.1} parent=1 // pred_region
      %18 = vsyncadd [#allocation4], 0
      %s19 = sshll.u32 %s0, 4
      %s20 = int_to_ptr.hbm [resolvable:$true] %s19
      %s21 = sshll.u32 [#allocation3], 4
      %s22 = int_to_ptr.vmem [resolvable:$true] %s21
      %27 = dma.hbm_to_vmem [thread:$0]  %s20, 256, %s22, [#allocation4], 128, 128, 8
    $region5: #{tpu_custom_call.1} parent=1 // pred_fallthru
      _
    // Predicated region
    $region6: #{tpu_custom_call.1} parent=1 // pred_check
      _
    $region7: #{tpu_custom_call.1} parent=1 // pred_check_branch
      %29 = sbr.rel (0) target = $region9
    $region8: #{tpu_custom_call.1} parent=1 // pred_region
      %31 = vsyncadd [#allocation7], 0
      %s32 = sshll.u32 %s1, 4
      %s33 = int_to_ptr.hbm [resolvable:$true] %s32
      %s34 = sshll.u32 [#allocation6], 4
      %s35 = int_to_ptr.vmem [resolvable:$true] %s34
      %40 = dma.hbm_to_vmem [thread:$0]  %s33, 1024, %s35, [#allocation7], 64, 64, 4
    $region9: #{tpu_custom_call.1} parent=1 // pred_fallthru
      _
    // Predicated region
    $region10: #{tpu_custom_call.1} parent=1 // pred_check
      _
    $region11: #{tpu_custom_call.1} parent=1 // pred_check_branch
      %42 = sbr.rel (0) target = $region13
    $region12: #{tpu_custom_call.1} parent=1 // pred_region
      _
    $region13: #{tpu_custom_call.1} parent=1 // pred_fallthru
      _
    // Predicated region
    $region14: #{tpu_custom_call.1} parent=1 // pred_check
      _
    $region15: #{tpu_custom_call.1} parent=1 // pred_check_branch
      %44 = sbr.rel (0) target = $region17
    $region16: #{tpu_custom_call.1} parent=1 // pred_region
      %46 = vsyncadd [#allocation7], 0
      %s47 = sshll.u32 %s3, 4
      %s48 = int_to_ptr.hbm [resolvable:$true] %s47
      %s49 = sshll.u32 [#allocation8], 4
      %s50 = int_to_ptr.vmem [resolvable:$true] %s49
      %55 = dma.hbm_to_vmem [thread:$0]  %s48, 1024, %s50, [#allocation7], 64, 64, 4
    $region17: #{tpu_custom_call.1} parent=1 // pred_fallthru
      _
    // Predicated region
    $region18: #{tpu_custom_call.1} parent=1 // pred_check
      _
    $region19: #{tpu_custom_call.1} parent=1 // pred_check_branch
      %57 = sbr.rel (0) target = $region21
    $region20: #{tpu_custom_call.1} parent=1 // pred_region
      _
    $region21: #{tpu_custom_call.1} parent=1 // pred_fallthru
      _
    // Predicated region
    $region22: #{tpu_custom_call.1} parent=1 // pred_check
      _
    $region23: #{tpu_custom_call.1} parent=1 // pred_check_branch
      %59 = sbr.rel (0) target = $region25
    $region24: #{tpu_custom_call.1} parent=1 // pred_region
      _
    $region25: #{tpu_custom_call.1} parent=1 // pred_fallthru
      _
    // Predicated region
    $region26: #{tpu_custom_call.1} parent=1 // pred_check
      _
    $region27: #{tpu_custom_call.1} parent=1 // pred_check_branch
      %61 = sbr.rel (0) target = $region29
    $region28: #{tpu_custom_call.1} parent=1 // pred_region
      _
    $region29: #{tpu_custom_call.1} parent=1 // pred_fallthru
      _
    // Predicated region
    $region30: #{tpu_custom_call.1} parent=1 // pred_check
      _
    $region31: #{tpu_custom_call.1} parent=1 // pred_check_branch
      %63 = sbr.rel (0) target = $region33
    $region32: #{tpu_custom_call.1} parent=1 // pred_region
      %65 = dma.done [#allocation4], 256
    $region33: #{tpu_custom_call.1} parent=1 // pred_fallthru
      _
    // Predicated region
    $region34: #{tpu_custom_call.1} parent=1 // pred_check
      _
    $region35: #{tpu_custom_call.1} parent=1 // pred_check_branch
      %67 = sbr.rel (0) target = $region37
    $region36: #{tpu_custom_call.1} parent=1 // pred_region
      %69 = dma.done [#allocation7], 1024
    $region37: #{tpu_custom_call.1} parent=1 // pred_fallthru
      _
    // Predicated region
    $region38: #{tpu_custom_call.1} parent=1 // pred_check
      _
    $region39: #{tpu_custom_call.1} parent=1 // pred_check_branch
      %71 = sbr.rel (0) target = $region41
    $region40: #{tpu_custom_call.1} parent=1 // pred_region
      %73 = dma.done [#allocation7], 1024
    $region41: #{tpu_custom_call.1} parent=1 // pred_fallthru
      _
    %p74 = scmp.eq.s32.totalorder 0, 0
    // Predicated region
    $region42: #{tpu_custom_call.1} parent=1 // pred_check
      %p75 = pneg %p74
    $region43: #{tpu_custom_call.1} parent=1 // pred_check_branch
      %77 = sbr.rel (%p75) target = $region45
    $region44: #{tpu_custom_call.1} parent=1 // pred_region
      %78 = vst [vmem:[#allocation2] sm:$0xff] 0.0
      %79 = vst [vmem:[#allocation2 + $0x8] sm:$0xff] 0.0
    $region45: #{tpu_custom_call.1} parent=1 // pred_fallthru
      _
    %v80 = vld [vmem:[#allocation3] sm:$0xff]
    %v81 = vld [vmem:[#allocation3 + $0x8] sm:$0xff]
    %v82 = vpack.c.bf16 %v81, %v80
    %v83 = vld [vmem:[#allocation6] sm:$0xf]
    %v84 = vld [vmem:[#allocation6 + $0x4] sm:$0xf]
    %v85 = vld [vmem:[#allocation6 + $0x8] sm:$0xf]
    %v86 = vld [vmem:[#allocation6 + $0xc] sm:$0xf]
    %v87 = vld [vmem:[#allocation6 + $0x10] sm:$0xf]
    %v88 = vld [vmem:[#allocation6 + $0x14] sm:$0xf]
    %v89 = vld [vmem:[#allocation6 + $0x18] sm:$0xf]
    %v90 = vld [vmem:[#allocation6 + $0x1c] sm:$0xf]
    %v91 = vld [vmem:[#allocation6 + $0x20] sm:$0xf]
    %v92 = vld [vmem:[#allocation6 + $0x24] sm:$0xf]
    %v93 = vld [vmem:[#allocation6 + $0x28] sm:$0xf]
    %v94 = vld [vmem:[#allocation6 + $0x2c] sm:$0xf]
    %v95 = vld [vmem:[#allocation6 + $0x30] sm:$0xf]
    %v96 = vld [vmem:[#allocation6 + $0x34] sm:$0xf]
    %v97 = vld [vmem:[#allocation6 + $0x38] sm:$0xf]
    %v98 = vld [vmem:[#allocation6 + $0x3c] sm:$0xf]
    %v99 = vld [vmem:[%s2] sm:$0x1]
    %v101 = vperm.slane %v99, 0
    %v119 = vunpack.c.l.b16 %v83
    %v120 = vunpack.c.l.b16 %v84
    %v121 = vunpack.c.l.b16 %v85
    %v122 = vunpack.c.l.b16 %v86
    %v123 = vunpack.c.l.b16 %v87
    %v124 = vunpack.c.l.b16 %v88
    %v125 = vunpack.c.l.b16 %v89
    %v126 = vunpack.c.l.b16 %v90
    %v127 = vunpack.c.l.b16 %v91
    %v128 = vunpack.c.l.b16 %v92
    %v129 = vunpack.c.l.b16 %v93
    %v130 = vunpack.c.l.b16 %v94
    %v131 = vunpack.c.l.b16 %v95
    %v132 = vunpack.c.l.b16 %v96
    %v133 = vunpack.c.l.b16 %v97
    %v134 = vunpack.c.l.b16 %v98
    %v135 = vpack.c.b16 %v120, %v119
    %v136 = vpack.c.b16 %v122, %v121
    %v137 = vpack.c.b16 %v124, %v123
    %v138 = vpack.c.b16 %v126, %v125
    %v139 = vpack.c.b16 %v128, %v127
    %v140 = vpack.c.b16 %v130, %v129
    %v141 = vpack.c.b16 %v132, %v131
    %v142 = vpack.c.b16 %v134, %v133
    %151 = vmatpush.bf16.msra.mxu0 %v142
    %152 = vmatpush.bf16.msra.mxu0 %v141
    %153 = vmatpush.bf16.msra.mxu0 %v140
    %154 = vmatpush.bf16.msra.mxu0 %v139
    %155 = vmatpush.bf16.msra.mxu0 %v138
    %156 = vmatpush.bf16.msra.mxu0 %v137
    %157 = vmatpush.bf16.msra.mxu0 %v136
    %158 = vmatpush.bf16.msra.mxu0 %v135
    %159 = vmatmul.bf16.gmra.mxu0 %v82
    %v160 = vpop.f32.mrf.mxu0
    %v161 = vadd.f32 %v101, %v160
    %v162 = vpop.f32.mrf.mxu0
    %v163 = vadd.f32 %v101, %v162
    %164 = vdwg.mxu0
    %v165 = vmax.f32 %v161, 0.0
    %v166 = vmax.f32 %v163, 0.0
    %v167 = vld [vmem:[#allocation2] sm:$0xff]
    %v168 = vld [vmem:[#allocation2 + $0x8] sm:$0xff]
    %v169 = vpack.c.bf16 %v166, %v165
    %v170 = vld [vmem:[#allocation8] sm:$0xf]
    %v171 = vld [vmem:[#allocation8 + $0x4] sm:$0xf]
    %v172 = vld [vmem:[#allocation8 + $0x8] sm:$0xf]
    %v173 = vld [vmem:[#allocation8 + $0xc] sm:$0xf]
    %v174 = vld [vmem:[#allocation8 + $0x10] sm:$0xf]
    %v175 = vld [vmem:[#allocation8 + $0x14] sm:$0xf]
    %v176 = vld [vmem:[#allocation8 + $0x18] sm:$0xf]
    %v177 = vld [vmem:[#allocation8 + $0x1c] sm:$0xf]
    %v178 = vld [vmem:[#allocation8 + $0x20] sm:$0xf]
    %v179 = vld [vmem:[#allocation8 + $0x24] sm:$0xf]
    %v180 = vld [vmem:[#allocation8 + $0x28] sm:$0xf]
    %v181 = vld [vmem:[#allocation8 + $0x2c] sm:$0xf]
    %v182 = vld [vmem:[#allocation8 + $0x30] sm:$0xf]
    %v183 = vld [vmem:[#allocation8 + $0x34] sm:$0xf]
    %v184 = vld [vmem:[#allocation8 + $0x38] sm:$0xf]
    %v185 = vld [vmem:[#allocation8 + $0x3c] sm:$0xf]
    %v202 = vunpack.c.l.b16 %v170
    %v203 = vunpack.c.l.b16 %v171
    %v204 = vunpack.c.l.b16 %v172
    %v205 = vunpack.c.l.b16 %v173
    %v206 = vunpack.c.l.b16 %v174
    %v207 = vunpack.c.l.b16 %v175
    %v208 = vunpack.c.l.b16 %v176
    %v209 = vunpack.c.l.b16 %v177
    %v210 = vunpack.c.l.b16 %v178
    %v211 = vunpack.c.l.b16 %v179
    %v212 = vunpack.c.l.b16 %v180
    %v213 = vunpack.c.l.b16 %v181
    %v214 = vunpack.c.l.b16 %v182
    %v215 = vunpack.c.l.b16 %v183
    %v216 = vunpack.c.l.b16 %v184
    %v217 = vunpack.c.l.b16 %v185
    %v218 = vpack.c.b16 %v203, %v202
    %v219 = vpack.c.b16 %v205, %v204
    %v220 = vpack.c.b16 %v207, %v206
    %v221 = vpack.c.b16 %v209, %v208
    %v222 = vpack.c.b16 %v211, %v210
    %v223 = vpack.c.b16 %v213, %v212
    %v224 = vpack.c.b16 %v215, %v214
    %v225 = vpack.c.b16 %v217, %v216
    %234 = vmatpush.bf16.msra.mxu0 %v225
    %235 = vmatpush.bf16.msra.mxu0 %v224
    %236 = vmatpush.bf16.msra.mxu0 %v223
    %237 = vmatpush.bf16.msra.mxu0 %v222
    %238 = vmatpush.bf16.msra.mxu0 %v221
    %239 = vmatpush.bf16.msra.mxu0 %v220
    %240 = vmatpush.bf16.msra.mxu0 %v219
    %241 = vmatpush.bf16.msra.mxu0 %v218
    %242 = vmatmul.bf16.gmra.mxu0 %v169
    %v243 = vpop.f32.mrf.mxu0
    %v244 = vadd.f32 0.0, %v243
    %v245 = vpop.f32.mrf.mxu0
    %v246 = vadd.f32 0.0, %v245
    %247 = vdwg.mxu0
    %v248 = vadd.f32 %v167, %v244
    %v249 = vadd.f32 %v168, %v246
    %250 = vst [vmem:[#allocation2] sm:$0xff] %v248
    %251 = vst [vmem:[#allocation2 + $0x8] sm:$0xff] %v249
    // Predicated region
    $region46: #{tpu_custom_call.1} parent=1 // pred_check
      %p252 = pneg %p74
    $region47: #{tpu_custom_call.1} parent=1 // pred_check_branch
      %254 = sbr.rel (%p252) target = $region49
    $region48: #{tpu_custom_call.1} parent=1 // pred_region
      %v255 = vld [vmem:[#allocation2] sm:$0xff]
      %v256 = vld [vmem:[#allocation2 + $0x8] sm:$0xff]
      %v257 = vld [vmem:[%s4] sm:$0x1]
      %v259 = vperm.slane %v257, 0
      %v261 = vadd.f32 %v255, %v259
      %v262 = vadd.f32 %v256, %v259
      %v263 = vadd.f32 %v261, %v80
      %v264 = vadd.f32 %v262, %v81
      %v265 = vlaneseq
      %v266 = vand.u32 %v265, 127
      %vm267 = vcmp.lt.s32.totalorder %v266, 32
      %v268 = vsel %vm267, 1, 0
      %vm269 = vcmp.eq.s32.totalorder %v268, 1
      %v270 = vsel %vm269, %v263, 0.0
      %v271 = vsel %vm269, %v264, 0.0
      %272 = vadd.xlane.f32.xlu0 %v270
      %v273 = vpop.xlane.xlu0 %272
      %274 = vadd.xlane.f32.xlu0 %v271
      %v275 = vpop.xlane.xlu0 %274
      %v276 = vmul.f32 %v273, 0.03125
      %v277 = vmul.f32 %v275, 0.03125
      %v278 = vsub.f32 %v270, %v276
      %v279 = vsub.f32 %v271, %v277
      %v280 = vsel %vm269, %v278, 0.0
      %v281 = vsel %vm269, %v279, 0.0
      %v282 = vmul.f32 %v280, %v280
      %v283 = vmul.f32 %v281, %v281
      %284 = vadd.xlane.f32.xlu0 %v282
      %v285 = vpop.xlane.xlu0 %284
      %286 = vadd.xlane.f32.xlu0 %v283
      %v287 = vpop.xlane.xlu0 %286
      %v288 = vmul.f32 %v285, 0.03125
      %v289 = vmul.f32 %v287, 0.03125
      %v290 = vadd.f32 %v288, 1e-05
      %v291 = vadd.f32 %v289, 1e-05
      %v292 = vrsqrt.pop %v290
      %v293 = vmul.f32 %v292, %v290
      %v294 = vmul.f32 %v293, %v292
      %v295 = vmul.f32 0.5, %v294
      %v296 = vsub.f32 1.5, %v295
      %v297 = vmul.f32 %v292, %v296
      %vm298 = vweird.f32 %v290
      %vm299 = vweird.f32 %v292
      %vm300 = vmor %vm298, %vm299
      %v301 = vsel %vm300, %v292, %v297
      %v302 = vrsqrt.pop %v291
      %v303 = vmul.f32 %v302, %v291
      %v304 = vmul.f32 %v303, %v302
      %v305 = vmul.f32 0.5, %v304
      %v306 = vsub.f32 1.5, %v305
      %v307 = vmul.f32 %v302, %v306
      %vm308 = vweird.f32 %v291
      %vm309 = vweird.f32 %v302
      %vm310 = vmor %vm308, %vm309
      %v311 = vsel %vm310, %v302, %v307
      %v312 = vmul.f32 %v280, %v301
      %v313 = vmul.f32 %v281, %v311
      %v314 = vld [vmem:[%s5] sm:$0x1]
      %v316 = vperm.slane %v314, 0
      %v318 = vmul.f32 %v312, %v316
      %v319 = vmul.f32 %v313, %v316
      %v320 = vld [vmem:[%s6] sm:$0x1]
      %v322 = vperm.slane %v320, 0
      %v324 = vadd.f32 %v318, %v322
      %v325 = vadd.f32 %v319, %v322
      %326 = vst [vmem:[#allocation9] sm:$0xff] %v324
      %327 = vst [vmem:[#allocation9 + $0x8] sm:$0xff] %v325
    $region49: #{tpu_custom_call.1} parent=1 // pred_fallthru
      _
    // Predicated region
    $region50: #{tpu_custom_call.1} parent=1 // pred_check
      _
    $region51: #{tpu_custom_call.1} parent=1 // pred_check_branch
      %329 = sbr.rel (0) target = $region53
    $region52: #{tpu_custom_call.1} parent=1 // pred_region
      %331 = vsyncadd [#allocation5], 0
      %s332 = sshll.u32 [#allocation9], 4
      %s333 = int_to_ptr.vmem [resolvable:$true] %s332
      %s334 = sshll.u32 %s7, 4
      %s335 = int_to_ptr.hbm [resolvable:$true] %s334
      %340 = dma.vmem_to_hbm [thread:$0]  %s333, 256, %s335, [#allocation5], 128, 128, 8
    $region53: #{tpu_custom_call.1} parent=1 // pred_fallthru
      _
    // Predicated region
    $region54: #{tpu_custom_call.1} parent=1 // pred_check
      _
    $region55: #{tpu_custom_call.1} parent=1 // pred_check_branch
      %342 = sbr.rel (0) target = $region57
    $region56: #{tpu_custom_call.1} parent=1 // pred_region
      %344 = dma.done [#allocation5], 256
    $region57: #{tpu_custom_call.1} parent=1 // pred_fallthru
      _
    %345 = vsyncpa [#allocation4], 1
    %346 = vsyncpa [#allocation7], 1
    %347 = vsyncpa [#allocation5], 1

</llo_original>
